<compile_context>
chip_gen: v6e
topology: v6e:2x2x1
jax: 0.10.0
libtpu: 0.0.40
codegen_flags: <defaults>
</compile_context>

<pallas_src>
import functools

import jax
import jax.numpy as jnp
from jax.experimental import pallas as pl
from jax.experimental.pallas import tpu as pltpu


# -----------------------------------------------------------------------------
# Pallas kernel: full forward pass (GCN x2 -> LSTM x2 (seq len 1) -> head)
# -----------------------------------------------------------------------------
def _tgnn_kernel(N, F, H, F16, VX, mat_ref, vec_ref, o_ref):
    # mat_ref (bf16, width 3H), 16-row-aligned sub-blocks:
    #   [0        : F        )  w1    (F, H)
    #   [F16      : F16+H    )  w2    (H, H)
    #   [F16+H    : F16+3H   )  wih1  (2H, 3H)   gates [i, g, o]
    #   [F16+3H   : F16+4H   )  wih2  (H, 3H)    gates [i, g, o]
    #   [F16+4H   : F16+4H+N )  A_hat (N, N)
    # vec_ref (f32, width 3H), rows:
    #   0 b1, 1 s1, 2 t1, 3 b2, 4 s2, 5 t2, 6 bl1(3H), 7 bl2(3H),
    #   8 wl packed [wl_h1 | wl_h2 | wl_x] (2H+F), 9 bl (lane 0),
    #   [VX : VX+N) X (N, F)
    G = 3 * H
    r_w2 = F16
    r_wih1 = F16 + H
    r_wih2 = F16 + 3 * H
    r_a = F16 + 4 * H

    A = mat_ref[r_a:r_a + N, 0:N]                         # (N, N) bf16
    Xf = vec_ref[VX:VX + N, 0:F]                          # (N, F) f32
    Xb = Xf.astype(jnp.bfloat16)

    # --- GCNConv 1: relu(A_hat @ (X @ W1) + b1), then eval-BatchNorm scale/shift
    xw = jnp.dot(Xb, mat_ref[0:F, 0:H], preferred_element_type=jnp.float32)
    h1 = (jnp.dot(A, xw.astype(jnp.bfloat16), preferred_element_type=jnp.float32)
          + vec_ref[0:1, 0:H])
    h1 = jnp.maximum(h1, 0.0)
    h1 = h1 * vec_ref[1:2, 0:H] + vec_ref[2:3, 0:H]
    h1b = h1.astype(jnp.bfloat16)                         # hoisted; reused below
    # TODO(synk): dropout layers are identity (eval mode); torch RNG not reproduced.

    # --- GCNConv 2: relu((A_hat @ h1) @ W2 + b2), then eval-BatchNorm
    ah = jnp.dot(A, h1b, preferred_element_type=jnp.float32)
    h2 = (jnp.dot(ah.astype(jnp.bfloat16), mat_ref[r_w2:r_w2 + H, 0:H],
                  preferred_element_type=jnp.float32)
          + vec_ref[3:4, 0:H])
    h2 = jnp.maximum(h2, 0.0)
    h2 = h2 * vec_ref[4:5, 0:H] + vec_ref[5:6, 0:H]
    h2b = h2.astype(jnp.bfloat16)

    # --- LSTM 1 (seq_len = window = 1, h0 = c0 = 0).
    # concat([h1, h2], 1) done as a lane concat -> single (N,2H)@(2H,3H) push.
    # Forget gate dropped (c0 == 0); packed gate order [i, g, o]; W_hh unused.
    h12 = jnp.concatenate([h1b, h2b], axis=1)             # (N, 2H) bf16
    g1 = (jnp.dot(h12, mat_ref[r_wih1:r_wih1 + 2 * H, 0:G],
                  preferred_element_type=jnp.float32)
          + vec_ref[6:7, 0:G])
    i1 = jax.nn.sigmoid(g1[:, 0:H])
    gg1 = jnp.tanh(g1[:, H:2 * H])
    o1 = jax.nn.sigmoid(g1[:, 2 * H:3 * H])
    hn1 = o1 * jnp.tanh(i1 * gg1)

    # --- LSTM 2 (input = output of LSTM 1, h0 = c0 = 0)
    g2 = (jnp.dot(hn1.astype(jnp.bfloat16), mat_ref[r_wih2:r_wih2 + H, 0:G],
                  preferred_element_type=jnp.float32)
          + vec_ref[7:8, 0:G])
    i2 = jax.nn.sigmoid(g2[:, 0:H])
    gg2 = jnp.tanh(g2[:, H:2 * H])
    o2 = jax.nn.sigmoid(g2[:, 2 * H:3 * H])
    hn2 = o2 * jnp.tanh(i2 * gg2)

    # --- Head: relu(concat([hn1, hn2, S=X], 1)) -> Linear(., 1) -> tanh.
    # Single fused VPU multiply + one cross-lane reduction (no 1-column matmul).
    cat = jnp.concatenate([jnp.maximum(hn1, 0.0),
                           jnp.maximum(hn2, 0.0),
                           jnp.maximum(Xf, 0.0)], axis=1)  # (N, 2H+F) f32
    head = (jnp.sum(cat * vec_ref[8:9, 0:2 * H + F], axis=-1, keepdims=True)
            + vec_ref[9:10, 0:1])
    # TODO(synk): for a batched / large-N variant emit a lane-dense output
    # instead of (N, 1) to avoid masked 1-lane stores.
    o_ref[...] = jnp.tanh(head)


# -----------------------------------------------------------------------------
# Dense normalized adjacency (GCNConv norm with added self-loops).
# Duplicate edges accumulate (scatter-add), matching PyG. One-time preparation.
# -----------------------------------------------------------------------------
def build_norm_adj(edge_index, edge_weight, num_nodes):
    src, dst = edge_index[0], edge_index[1]
    A = jnp.zeros((num_nodes, num_nodes), jnp.float32).at[dst, src].add(edge_weight)
    A = A + jnp.eye(num_nodes, dtype=jnp.float32)          # self loops, weight 1
    deg = A.sum(axis=1)
    dinv = jnp.where(deg > 0, 1.0 / jnp.sqrt(deg), 0.0)
    return A * dinv[:, None] * dinv[None, :]


# -----------------------------------------------------------------------------
# Deterministic parameter initialization (matches the module's shapes)
# -----------------------------------------------------------------------------
def init_params(key, dim_in, dim_h):
    ks = jax.random.split(key, 14)
    F, H = dim_in, dim_h
    scale = 0.1

    # GCNConv 1 / 2 : weight (in, out), bias (out,)
    w1 = scale * jax.random.normal(ks[0], (F, H), jnp.float32)
    b1 = scale * jax.random.normal(ks[1], (H,), jnp.float32)
    w2 = scale * jax.random.normal(ks[2], (H, H), jnp.float32)
    b2 = scale * jax.random.normal(ks[3], (H,), jnp.float32)

    # BatchNorm1d (eval): running_mean=0, running_var=1, eps=1e-5 folded into s/t.
    # TODO(synk): for trained checkpoints fold the real running stats instead.
    eps = 1e-5
    g1 = 1.0 + scale * jax.random.normal(ks[4], (H,), jnp.float32)
    be1 = scale * jax.random.normal(ks[5], (H,), jnp.float32)
    g2 = 1.0 + scale * jax.random.normal(ks[6], (H,), jnp.float32)
    be2 = scale * jax.random.normal(ks[7], (H,), jnp.float32)
    s1, t1 = g1 / jnp.sqrt(1.0 + eps), be1
    s2, t2 = g2 / jnp.sqrt(1.0 + eps), be2

    # LSTMs: PyTorch gate order [i, f, g, o]; the f gate is dead (c0 == 0) so its
    # columns are dropped -> packed gate order [i, g, o]. h0 == 0 so W_hh is unused.
    # bl1/bl2 stand for the combined bias b_ih + b_hh (sampled once here).
    # TODO(synk): when porting real torch weights, set bl1/bl2 = b_ih + b_hh.
    igo = jnp.concatenate([jnp.arange(0, H), jnp.arange(2 * H, 4 * H)])
    wih1 = (scale * jax.random.normal(ks[8], (2 * H, 4 * H), jnp.float32))[:, igo]
    bl1 = (scale * jax.random.normal(ks[9], (4 * H,), jnp.float32))[igo]
    wih2 = (scale * jax.random.normal(ks[10], (H, 4 * H), jnp.float32))[:, igo]
    bl2 = (scale * jax.random.normal(ks[11], (4 * H,), jnp.float32))[igo]

    # Final Linear(2H + F, 1): weight flattened to (2H+F,), bias scalar
    wl = scale * jax.random.normal(ks[12], (2 * H + F,), jnp.float32)
    bl = scale * jax.random.normal(ks[13], (1,), jnp.float32)

    return dict(w1=w1, b1=b1, s1=s1, t1=t1, w2=w2, b2=b2, s2=s2, t2=t2,
                wih1=wih1, bl1=bl1, wih2=wih2, bl2=bl2, wl=wl, bl=bl)


# -----------------------------------------------------------------------------
# Pack everything the kernel needs into TWO slabs (one bf16, one f32).
# Call once per graph/params; only the X rows of `vec` change across steps.
# -----------------------------------------------------------------------------
def pack_inputs(params, a_hat, x, num_nodes, dim_in, dim_h):
    N, F, H = num_nodes, dim_in, dim_h
    G = 3 * H
    assert H % 16 == 0, "bf16 slab sub-blocks need 16-row alignment"
    assert F <= H and N <= G and 2 * H + F <= G
    F16 = ((F + 15) // 16) * 16
    N16 = ((N + 15) // 16) * 16
    VX = 16                                   # 8-aligned row where X starts (>= 10)

    def block(m, rows):
        r, c = m.shape
        return jnp.zeros((rows, G), jnp.float32).at[:r, :c].set(m)

    mat = jnp.concatenate([
        block(params["w1"], F16),
        block(params["w2"], H),
        block(params["wih1"], 2 * H),
        block(params["wih2"], H),
        block(a_hat, N16),
    ], axis=0).astype(jnp.bfloat16)

    vec = jnp.zeros((VX + N16, G), jnp.float32)
    vec = vec.at[0, :H].set(params["b1"])
    vec = vec.at[1, :H].set(params["s1"])
    vec = vec.at[2, :H].set(params["t1"])
    vec = vec.at[3, :H].set(params["b2"])
    vec = vec.at[4, :H].set(params["s2"])
    vec = vec.at[5, :H].set(params["t2"])
    vec = vec.at[6, :G].set(params["bl1"])
    vec = vec.at[7, :G].set(params["bl2"])
    vec = vec.at[8, :2 * H + F].set(params["wl"])
    vec = vec.at[9, 0].set(params["bl"][0])
    vec = vec.at[VX:VX + N, :F].set(x)
    return mat, vec, F16, VX


# -----------------------------------------------------------------------------
# Build the jitted forward: two pre-packed slabs in, (N, 1) out.
# -----------------------------------------------------------------------------
def make_tgnn_forward(num_nodes, dim_in, dim_h, F16, VX):
    N, F, H = num_nodes, dim_in, dim_h
    kernel = functools.partial(_tgnn_kernel, N, F, H, F16, VX)
    vmem = pl.BlockSpec(memory_space=pltpu.MemorySpace.VMEM)
    # TODO(synk): for large N, drop the dense resident A_hat (sparse gather via
    # PrefetchScalarGridSpec), add a row-tiled grid axis marked "parallel" so it
    # shards across v7x's two TensorCores, and size tiles from the 64 MiB VMEM.
    # TODO(synk): batch multiple graph snapshots/timesteps along the row axis to
    # fill the 256-wide MXU on v6e/v7x; at N=16 single-shot is latency-optimal.
    call = pl.pallas_call(
        kernel,
        out_shape=jax.ShapeDtypeStruct((N, 1), jnp.float32),
        in_specs=[vmem, vmem],
        out_specs=vmem,
        compiler_params=pltpu.CompilerParams(vmem_limit_bytes=8 * 1024 * 1024),
    )
    return jax.jit(call)


if __name__ == "__main__":
    N, F, H = 16, 4, 32   # num_nodes, dim_in, dim_h
    key = jax.random.PRNGKey(0)
    k_x, k_src, k_dst, k_w, k_p = jax.random.split(key, 5)

    x = jax.random.normal(k_x, (N, F), jnp.float32)

    # ring graph + random extra edges
    ring_src = jnp.arange(N, dtype=jnp.int32)
    ring_dst = (ring_src + 1) % N
    rnd_src = jax.random.randint(k_src, (2 * N,), 0, N, dtype=jnp.int32)
    rnd_dst = jax.random.randint(k_dst, (2 * N,), 0, N, dtype=jnp.int32)
    edge_index = jnp.stack([jnp.concatenate([ring_src, rnd_src]),
                            jnp.concatenate([ring_dst, rnd_dst])])
    edge_weight = jax.random.uniform(k_w, (edge_index.shape[1],),
                                     minval=0.1, maxval=1.0, dtype=jnp.float32)

    params = init_params(k_p, F, H)

    # One-time preparation (adjacency normalization + slab packing), hoisted out
    # of the per-call path. The per-step forward only touches mat/vec.
    a_hat = build_norm_adj(edge_index, edge_weight, N)
    mat, vec, F16, VX = pack_inputs(params, a_hat, x, N, F, H)
    mat, vec = jax.block_until_ready((mat, vec))

    fwd = make_tgnn_forward(N, F, H, F16, VX)
    out = jax.block_until_ready(fwd(mat, vec))

    assert out.shape == (N, 1) and out.dtype == jnp.float32
    assert bool(jnp.all(jnp.isfinite(out)))
    print("KERNEL_OK")
</pallas_src>

<mosaic_0001>
module attributes {stable_mosaic.version = 11 : i64} {
  func.func @_tgnn_kernel(%arg0: memref<160x96xbf16, #tpu.memory_space<vmem>>, %arg1: memref<32x96xf32, #tpu.memory_space<vmem>>, %arg2: memref<16x1xf32, #tpu.memory_space<vmem>>) attributes {dimension_semantics = [], scalar_prefetch = 0 : i64, scratch_operands = 0 : i64, tpu.core_type = #tpu.core_type<tc>} {
    %c144 = arith.constant 144 : index
    %c0 = arith.constant 0 : index
    %0 = vector.load %arg0[%c144, %c0] : memref<160x96xbf16, #tpu.memory_space<vmem>>, vector<16x16xbf16>
    %c16 = arith.constant 16 : index
    %c0_0 = arith.constant 0 : index
    %1 = vector.load %arg1[%c16, %c0_0] : memref<32x96xf32, #tpu.memory_space<vmem>>, vector<16x4xf32>
    %2 = arith.truncf %1 : vector<16x4xf32> to vector<16x4xbf16>
    %c0_1 = arith.constant 0 : index
    %c0_2 = arith.constant 0 : index
    %3 = vector.load %arg0[%c0_1, %c0_2] : memref<160x96xbf16, #tpu.memory_space<vmem>>, vector<4x32xbf16>
    %cst = arith.constant dense<0.000000e+00> : vector<16x32xf32>
    %4 = tpu.matmul %2, %3, %cst {dimension_numbers = #tpu.dot_dimension_numbers<[1], [0], [0], [1], [0, 0, 1, 1], [], []>} : vector<16x4xbf16>, vector<4x32xbf16>, vector<16x32xf32> -> vector<16x32xf32>
    %5 = arith.truncf %4 : vector<16x32xf32> to vector<16x32xbf16>
    %cst_3 = arith.constant dense<0.000000e+00> : vector<16x32xf32>
    %6 = tpu.matmul %0, %5, %cst_3 {dimension_numbers = #tpu.dot_dimension_numbers<[1], [0], [0], [1], [0, 0, 1, 1], [], []>} : vector<16x16xbf16>, vector<16x32xbf16>, vector<16x32xf32> -> vector<16x32xf32>
    %c0_4 = arith.constant 0 : index
    %c0_5 = arith.constant 0 : index
    %7 = vector.load %arg1[%c0_4, %c0_5] : memref<32x96xf32, #tpu.memory_space<vmem>>, vector<1x32xf32>
    %8 = vector.broadcast %7 : vector<1x32xf32> to vector<16x32xf32>
    %9 = arith.addf %6, %8 : vector<16x32xf32>
    %cst_6 = arith.constant 0.000000e+00 : f32
    %10 = vector.broadcast %cst_6 : f32 to vector<16x32xf32>
    %11 = arith.maximumf %9, %10 : vector<16x32xf32>
    %c1 = arith.constant 1 : index
    %c0_7 = arith.constant 0 : index
    %12 = vector.load %arg1[%c1, %c0_7] : memref<32x96xf32, #tpu.memory_space<vmem>>, vector<1x32xf32>
    %13 = vector.broadcast %12 : vector<1x32xf32> to vector<16x32xf32>
    %14 = arith.mulf %11, %13 : vector<16x32xf32>
    %c2 = arith.constant 2 : index
    %c0_8 = arith.constant 0 : index
    %15 = vector.load %arg1[%c2, %c0_8] : memref<32x96xf32, #tpu.memory_space<vmem>>, vector<1x32xf32>
    %16 = vector.broadcast %15 : vector<1x32xf32> to vector<16x32xf32>
    %17 = arith.addf %14, %16 : vector<16x32xf32>
    %18 = arith.truncf %17 : vector<16x32xf32> to vector<16x32xbf16>
    %cst_9 = arith.constant dense<0.000000e+00> : vector<16x32xf32>
    %19 = tpu.matmul %0, %18, %cst_9 {dimension_numbers = #tpu.dot_dimension_numbers<[1], [0], [0], [1], [0, 0, 1, 1], [], []>} : vector<16x16xbf16>, vector<16x32xbf16>, vector<16x32xf32> -> vector<16x32xf32>
    %20 = arith.truncf %19 : vector<16x32xf32> to vector<16x32xbf16>
    %c16_10 = arith.constant 16 : index
    %c0_11 = arith.constant 0 : index
    %21 = vector.load %arg0[%c16_10, %c0_11] : memref<160x96xbf16, #tpu.memory_space<vmem>>, vector<32x32xbf16>
    %cst_12 = arith.constant dense<0.000000e+00> : vector<16x32xf32>
    %22 = tpu.matmul %20, %21, %cst_12 {dimension_numbers = #tpu.dot_dimension_numbers<[1], [0], [0], [1], [0, 0, 1, 1], [], []>} : vector<16x32xbf16>, vector<32x32xbf16>, vector<16x32xf32> -> vector<16x32xf32>
    %c3 = arith.constant 3 : index
    %c0_13 = arith.constant 0 : index
    %23 = vector.load %arg1[%c3, %c0_13] : memref<32x96xf32, #tpu.memory_space<vmem>>, vector<1x32xf32>
    %24 = vector.broadcast %23 : vector<1x32xf32> to vector<16x32xf32>
    %25 = arith.addf %22, %24 : vector<16x32xf32>
    %cst_14 = arith.constant 0.000000e+00 : f32
    %26 = vector.broadcast %cst_14 : f32 to vector<16x32xf32>
    %27 = arith.maximumf %25, %26 : vector<16x32xf32>
    %c4 = arith.constant 4 : index
    %c0_15 = arith.constant 0 : index
    %28 = vector.load %arg1[%c4, %c0_15] : memref<32x96xf32, #tpu.memory_space<vmem>>, vector<1x32xf32>
    %29 = vector.broadcast %28 : vector<1x32xf32> to vector<16x32xf32>
    %30 = arith.mulf %27, %29 : vector<16x32xf32>
    %c5 = arith.constant 5 : index
    %c0_16 = arith.constant 0 : index
    %31 = vector.load %arg1[%c5, %c0_16] : memref<32x96xf32, #tpu.memory_space<vmem>>, vector<1x32xf32>
    %32 = vector.broadcast %31 : vector<1x32xf32> to vector<16x32xf32>
    %33 = arith.addf %30, %32 : vector<16x32xf32>
    %34 = arith.truncf %33 : vector<16x32xf32> to vector<16x32xbf16>
    %35 = tpu.concatenate %18, %34 in 1 : vector<16x32xbf16>, vector<16x32xbf16> -> vector<16x64xbf16>
    %c48 = arith.constant 48 : index
    %c0_17 = arith.constant 0 : index
    %36 = vector.load %arg0[%c48, %c0_17] : memref<160x96xbf16, #tpu.memory_space<vmem>>, vector<64x96xbf16>
    %cst_18 = arith.constant dense<0.000000e+00> : vector<16x96xf32>
    %37 = tpu.matmul %35, %36, %cst_18 {dimension_numbers = #tpu.dot_dimension_numbers<[1], [0], [0], [1], [0, 0, 1, 1], [], []>} : vector<16x64xbf16>, vector<64x96xbf16>, vector<16x96xf32> -> vector<16x96xf32>
    %c6 = arith.constant 6 : index
    %c0_19 = arith.constant 0 : index
    %38 = vector.load %arg1[%c6, %c0_19] : memref<32x96xf32, #tpu.memory_space<vmem>>, vector<1x96xf32>
    %39 = vector.broadcast %38 : vector<1x96xf32> to vector<16x96xf32>
    %40 = arith.addf %37, %39 : vector<16x96xf32>
    %41 = vector.extract_strided_slice %40 {offsets = [0, 0], sizes = [16, 32], strides = [1, 1]} : vector<16x96xf32> to vector<16x32xf32>
    %42 = arith.negf %41 : vector<16x32xf32>
    %43 = math.exp %42 : vector<16x32xf32>
    %cst_20 = arith.constant 1.000000e+00 : f32
    %44 = vector.broadcast %cst_20 : f32 to vector<16x32xf32>
    %45 = arith.addf %44, %43 : vector<16x32xf32>
    %46 = arith.divf %44, %45 : vector<16x32xf32>
    %47 = vector.extract_strided_slice %40 {offsets = [0, 32], sizes = [16, 32], strides = [1, 1]} : vector<16x96xf32> to vector<16x32xf32>
    %48 = math.tanh %47 : vector<16x32xf32>
    %49 = vector.extract_strided_slice %40 {offsets = [0, 64], sizes = [16, 32], strides = [1, 1]} : vector<16x96xf32> to vector<16x32xf32>
    %50 = arith.negf %49 : vector<16x32xf32>
    %51 = math.exp %50 : vector<16x32xf32>
    %cst_21 = arith.constant 1.000000e+00 : f32
    %52 = vector.broadcast %cst_21 : f32 to vector<16x32xf32>
    %53 = arith.addf %52, %51 : vector<16x32xf32>
    %54 = arith.divf %52, %53 : vector<16x32xf32>
    %55 = arith.mulf %46, %48 : vector<16x32xf32>
    %56 = math.tanh %55 : vector<16x32xf32>
    %57 = arith.mulf %54, %56 : vector<16x32xf32>
    %58 = arith.truncf %57 : vector<16x32xf32> to vector<16x32xbf16>
    %c112 = arith.constant 112 : index
    %c0_22 = arith.constant 0 : index
    %59 = vector.load %arg0[%c112, %c0_22] : memref<160x96xbf16, #tpu.memory_space<vmem>>, vector<32x96xbf16>
    %cst_23 = arith.constant dense<0.000000e+00> : vector<16x96xf32>
    %60 = tpu.matmul %58, %59, %cst_23 {dimension_numbers = #tpu.dot_dimension_numbers<[1], [0], [0], [1], [0, 0, 1, 1], [], []>} : vector<16x32xbf16>, vector<32x96xbf16>, vector<16x96xf32> -> vector<16x96xf32>
    %c7 = arith.constant 7 : index
    %c0_24 = arith.constant 0 : index
    %61 = vector.load %arg1[%c7, %c0_24] : memref<32x96xf32, #tpu.memory_space<vmem>>, vector<1x96xf32>
    %62 = vector.broadcast %61 : vector<1x96xf32> to vector<16x96xf32>
    %63 = arith.addf %60, %62 : vector<16x96xf32>
    %64 = vector.extract_strided_slice %63 {offsets = [0, 0], sizes = [16, 32], strides = [1, 1]} : vector<16x96xf32> to vector<16x32xf32>
    %65 = arith.negf %64 : vector<16x32xf32>
    %66 = math.exp %65 : vector<16x32xf32>
    %cst_25 = arith.constant 1.000000e+00 : f32
    %67 = vector.broadcast %cst_25 : f32 to vector<16x32xf32>
    %68 = arith.addf %67, %66 : vector<16x32xf32>
    %69 = arith.divf %67, %68 : vector<16x32xf32>
    %70 = vector.extract_strided_slice %63 {offsets = [0, 32], sizes = [16, 32], strides = [1, 1]} : vector<16x96xf32> to vector<16x32xf32>
    %71 = math.tanh %70 : vector<16x32xf32>
    %72 = vector.extract_strided_slice %63 {offsets = [0, 64], sizes = [16, 32], strides = [1, 1]} : vector<16x96xf32> to vector<16x32xf32>
    %73 = arith.negf %72 : vector<16x32xf32>
    %74 = math.exp %73 : vector<16x32xf32>
    %cst_26 = arith.constant 1.000000e+00 : f32
    %75 = vector.broadcast %cst_26 : f32 to vector<16x32xf32>
    %76 = arith.addf %75, %74 : vector<16x32xf32>
    %77 = arith.divf %75, %76 : vector<16x32xf32>
    %78 = arith.mulf %69, %71 : vector<16x32xf32>
    %79 = math.tanh %78 : vector<16x32xf32>
    %80 = arith.mulf %77, %79 : vector<16x32xf32>
    %cst_27 = arith.constant 0.000000e+00 : f32
    %81 = vector.broadcast %cst_27 : f32 to vector<16x32xf32>
    %82 = arith.maximumf %57, %81 : vector<16x32xf32>
    %cst_28 = arith.constant 0.000000e+00 : f32
    %83 = vector.broadcast %cst_28 : f32 to vector<16x32xf32>
    %84 = arith.maximumf %80, %83 : vector<16x32xf32>
    %cst_29 = arith.constant 0.000000e+00 : f32
    %85 = vector.broadcast %cst_29 : f32 to vector<16x4xf32>
    %86 = arith.maximumf %1, %85 : vector<16x4xf32>
    %87 = tpu.concatenate %82, %84, %86 in 1 : vector<16x32xf32>, vector<16x32xf32>, vector<16x4xf32> -> vector<16x68xf32>
    %c8 = arith.constant 8 : index
    %c0_30 = arith.constant 0 : index
    %88 = vector.load %arg1[%c8, %c0_30] : memref<32x96xf32, #tpu.memory_space<vmem>>, vector<1x68xf32>
    %89 = vector.broadcast %88 : vector<1x68xf32> to vector<16x68xf32>
    %90 = arith.mulf %87, %89 : vector<16x68xf32>
    %cst_31 = arith.constant dense<0.000000e+00> : vector<16xf32>
    %91 = vector.multi_reduction <add>, %90, %cst_31 [1] : vector<16x68xf32> to vector<16xf32>
    %92 = vector.shape_cast %91 : vector<16xf32> to vector<16x1xf32>
    %c9 = arith.constant 9 : index
    %c0_32 = arith.constant 0 : index
    %93 = vector.load %arg1[%c9, %c0_32] : memref<32x96xf32, #tpu.memory_space<vmem>>, vector<1x1xf32>
    %94 = vector.broadcast %93 : vector<1x1xf32> to vector<16x1xf32>
    %95 = arith.addf %92, %94 : vector<16x1xf32>
    %96 = math.tanh %95 : vector<16x1xf32>
    %c0_33 = arith.constant 0 : index
    %c0_34 = arith.constant 0 : index
    %97 = vector.load %arg2[%c0_33, %c0_34] : memref<16x1xf32, #tpu.memory_space<vmem>>, vector<16x1xf32>
    tpu.vector_store %arg2[%c0_33, %c0_34], %96 {strides = array<i32>} : memref<16x1xf32, #tpu.memory_space<vmem>>, vector<16x1xf32>,
    return
  }
}

</mosaic_0001>

<llo_original>
// kernel: tpu_custom_call.1
$region0: #{tpu_custom_call.1}
  #allocation0 [shape = 'u32[]', space=smem, size = 0x4, offset = 0x4, fixed_abs, tag = 'smem constant byte address 0x4 - core index']
  #allocation1 [shape = 'u32[144,128]{1,0:T(1,128)}', space=vmem, size = 0x12000, scoped, tag = 'internal scratch']
  %s0 = inlined_call_operand.hbm [shape: bf16[160,96], index: 0, kind: input, shape index: {}]
  %s1 = inlined_call_operand.hbm [shape: f32[32,96], index: 1, kind: input, shape index: {}]
  %s2 = inlined_call_operand.vmem [shape: f32[16,1], index: 2, kind: output, shape index: {}]
  %s3 = sld [smem:[#allocation0]]
  $region26: #{tpu_custom_call.1} parent=0
    _
  %s5 = ssub.s32 1, %s3
  %s6 = scalar_select 0, %s5, %s3
  $region1: #{tpu_custom_call.1} parent=0
    #allocation2 [shape = 'u8[40960]{0}', space=vmem, size = 0xa000, scoped, tag = 'input window, operand 0, single buffered']
    #allocation3 [shape = 's32[1]{0}', space=sflag, size = 0x4, scoped, tag = 'scoped memory for tpu_custom_call.1']
    #allocation4 [shape = 'u8[16384]{0}', space=vmem, size = 0x4000, scoped, tag = 'input window, operand 1, single buffered']
    #allocation5 [shape = 's32[1]{0}', space=sflag, size = 0x4, scoped, tag = 'scoped memory for tpu_custom_call.1']
    %7 = vsyncpa [#allocation3], 0
    %8 = vsyncpa [#allocation5], 0
    // Predicated region
    $region2: #{tpu_custom_call.1} parent=1 // pred_check
      _
    $region3: #{tpu_custom_call.1} parent=1 // pred_check_branch
      %10 = sbr.rel (0) target = $region5
    $region4: #{tpu_custom_call.1} parent=1 // pred_region
      %s12 = ssub.s32 1280, 1280
      %13 = vsyncadd [#allocation3], %s12
      %s14 = sshll.u32 [#allocation2], 4
      %s15 = int_to_ptr.vmem [resolvable:$true] %s14
      %20 = dma.hbm_to_vmem [thread:$0]  %s0, 1280, %s15, [#allocation3], 64, 64, 4
    $region5: #{tpu_custom_call.1} parent=1 // pred_fallthru
      _
    // Predicated region
    $region6: #{tpu_custom_call.1} parent=1 // pred_check
      _
    $region7: #{tpu_custom_call.1} parent=1 // pred_check_branch
      %22 = sbr.rel (0) target = $region9
    $region8: #{tpu_custom_call.1} parent=1 // pred_region
      %s24 = ssub.s32 512, 512
      %25 = vsyncadd [#allocation5], %s24
      %s26 = sshll.u32 [#allocation4], 4
      %s27 = int_to_ptr.vmem [resolvable:$true] %s26
      %32 = dma.hbm_to_vmem [thread:$0]  %s1, 512, %s27, [#allocation5], 128, 128, 8
    $region9: #{tpu_custom_call.1} parent=1 // pred_fallthru
      _
    // Predicated region
    $region10: #{tpu_custom_call.1} parent=1 // pred_check
      _
    $region11: #{tpu_custom_call.1} parent=1 // pred_check_branch
      %34 = sbr.rel (0) target = $region13
    $region12: #{tpu_custom_call.1} parent=1 // pred_region
      %35 = dma.done [#allocation3], 1280
    $region13: #{tpu_custom_call.1} parent=1 // pred_fallthru
      _
    // Predicated region
    $region14: #{tpu_custom_call.1} parent=1 // pred_check
      _
    $region15: #{tpu_custom_call.1} parent=1 // pred_check_branch
      %37 = sbr.rel (0) target = $region17
    $region16: #{tpu_custom_call.1} parent=1 // pred_region
      %38 = dma.done [#allocation5], 512
    $region17: #{tpu_custom_call.1} parent=1 // pred_fallthru
      _
    %v40 = vld [vmem:[#allocation2 + $0x48] sm:$0xf]
    %v41 = vld [vmem:[#allocation2 + $0x4c] sm:$0xf]
    %v42 = vld [vmem:[#allocation4 + $0x10] sm:$0xff]
    %v43 = vld [vmem:[#allocation4 + $0x18] sm:$0xff]
    %v44 = vpack.c.bf16 %v43, %v42
    %v45 = vld [vmem:[#allocation2] sm:$0x3]
    %vm46 = vcmask 31744
    %v48 = vsel %vm46, %v44, 0
    %vm50 = vcmask 1041408
    %v52 = vsel %vm50, %v45, 0
    %54 = vmatprep.subr.bf16.mxu0 0
    %55 = vmatpush1.bf16.msra.mxu0 0
    %56 = vmatprep.subr.bf16.mxu0 0
    %57 = vmatpush1.bf16.msra.mxu0 0
    %58 = vmatprep.subr.bf16.mxu0 0
    %59 = vmatpush1.bf16.msra.mxu0 0
    %60 = vmatprep.subr.bf16.mxu0 0
    %61 = vmatpush1.bf16.msra.mxu0 0
    %62 = vmatprep.subr.bf16.mxu0 0
    %63 = vmatpush1.bf16.msra.mxu0 0
    %64 = vmatprep.subr.bf16.mxu0 0
    %65 = vmatpush1.bf16.msra.mxu0 0
    %66 = vmatprep.subr.bf16.mxu0 0
    %67 = vmatpush1.bf16.msra.mxu0 0
    %68 = vmatprep.subr.bf16.mxu0 0
    %69 = vmatpush1.bf16.msra.mxu0 %v52
    %70 = vmatprep.subr.bf16.mxu0 0
    %71 = vmatpush2.bf16.msra.mxu0 0
    %72 = vmatprep.subr.bf16.mxu0 0
    %73 = vmatpush2.bf16.msra.mxu0 0
    %74 = vmatprep.subr.bf16.mxu0 0
    %75 = vmatpush2.bf16.msra.mxu0 0
    %76 = vmatprep.subr.bf16.mxu0 0
    %77 = vmatpush2.bf16.msra.mxu0 0
    %78 = vmatprep.subr.bf16.mxu0 0
    %79 = vmatpush2.bf16.msra.mxu0 0
    %80 = vmatprep.subr.bf16.mxu0 0
    %81 = vmatpush2.bf16.msra.mxu0 0
    %82 = vmatprep.subr.bf16.mxu0 0
    %83 = vmatpush2.bf16.msra.mxu0 0
    %84 = vmatprep.subr.bf16.mxu0 0
    %85 = vmatpush2.bf16.msra.mxu0 0
    %86 = vmatprep.mubr.bf16.mxu0 0
    %87 = vmatmul.mubr.bf16.gmra.mxu0 %v48
    %v88 = vpop.f32.mrf.mxu0
    %v89 = vadd.f32 0.0, %v88
    %v90 = vpop.f32.mrf.mxu0
    %v91 = vpop.f32.mrf.mxu0
    %v92 = vadd.f32 0.0, %v91
    %v93 = vpop.f32.mrf.mxu0
    %94 = vdwg.mxu0
    %v95 = vpack.c.bf16 %v92, %v89
    %v96 = vld [vmem:[#allocation4] sm:$0x1]
    %v97 = vlaneseq
    %v98 = vshrl.u32 %v97, 7
    %v99 = vsub.s32 0, %v98
    %v100 = vrot.slane %v96, %v99
    %v103 = vunpack.c.l.b16 %v40
    %v104 = vunpack.c.l.b16 %v41
    %v105 = vpack.c.b16 %v104, %v103
    %vm106 = vcmask 130048
    %v108 = vsel %vm106, %v105, 0
    %110 = vmatprep.subr.bf16.mxu0 0
    %111 = vmatpush1.bf16.msra.mxu0 0
    %112 = vmatprep.subr.bf16.mxu0 0
    %113 = vmatpush1.bf16.msra.mxu0 0
    %114 = vmatprep.subr.bf16.mxu0 0
    %115 = vmatpush1.bf16.msra.mxu0 0
    %116 = vmatprep.subr.bf16.mxu0 0
    %117 = vmatpush1.bf16.msra.mxu0 0
    %118 = vmatprep.subr.bf16.mxu0 0
    %119 = vmatpush1.bf16.msra.mxu0 0
    %120 = vmatprep.subr.bf16.mxu0 0
    %121 = vmatpush1.bf16.msra.mxu0 0
    %122 = vmatprep.subr.bf16.mxu0 0
    %123 = vmatpush1.bf16.msra.mxu0 0
    %124 = vmatprep.subr.bf16.mxu0 0
    %125 = vmatpush1.bf16.msra.mxu0 %v95
    %126 = vmatprep.subr.bf16.mxu0 0
    %127 = vmatpush2.bf16.msra.mxu0 0
    %128 = vmatprep.subr.bf16.mxu0 0
    %129 = vmatpush2.bf16.msra.mxu0 0
    %130 = vmatprep.subr.bf16.mxu0 0
    %131 = vmatpush2.bf16.msra.mxu0 0
    %132 = vmatprep.subr.bf16.mxu0 0
    %133 = vmatpush2.bf16.msra.mxu0 0
    %134 = vmatprep.subr.bf16.mxu0 0
    %135 = vmatpush2.bf16.msra.mxu0 0
    %136 = vmatprep.subr.bf16.mxu0 0
    %137 = vmatpush2.bf16.msra.mxu0 0
    %138 = vmatprep.subr.bf16.mxu0 0
    %139 = vmatpush2.bf16.msra.mxu0 0
    %140 = vmatprep.subr.bf16.mxu0 0
    %141 = vmatpush2.bf16.msra.mxu0 0
    %142 = vmatprep.mubr.bf16.mxu0 0
    %143 = vmatmul.mubr.bf16.gmra.mxu0 %v108
    %v144 = vpop.f32.mrf.mxu0
    %v145 = vadd.f32 %v100, %v144
    %v146 = vpop.f32.mrf.mxu0
    %v147 = vpop.f32.mrf.mxu0
    %v148 = vadd.f32 %v100, %v147
    %v149 = vpop.f32.mrf.mxu0
    %150 = vdwg.mxu0
    %v151 = vmax.f32 %v145, 0.0
    %v152 = vmax.f32 %v148, 0.0
    %v153 = vld [vmem:[#allocation4 + $0x1] sm:$0x1]
    %v154 = vlaneseq
    %v155 = vshrl.u32 %v154, 7
    %v156 = vsub.s32 0, %v155
    %v157 = vrot.slane %v153, %v156
    %v158 = vmul.f32 %v151, %v157
    %v159 = vmul.f32 %v152, %v157
    %v160 = vld [vmem:[#allocation4 + $0x2] sm:$0x1]
    %v161 = vlaneseq
    %v162 = vshrl.u32 %v161, 7
    %v163 = vsub.s32 0, %v162
    %v164 = vrot.slane %v160, %v163
    %v165 = vadd.f32 %v158, %v164
    %v166 = vadd.f32 %v159, %v164
    %v167 = vpack.c.bf16 %v166, %v165
    %168 = vmatprep.subr.bf16.mxu0 0
    %169 = vmatpush1.bf16.msra.mxu0 0
    %170 = vmatprep.subr.bf16.mxu0 0
    %171 = vmatpush1.bf16.msra.mxu0 0
    %172 = vmatprep.subr.bf16.mxu0 0
    %173 = vmatpush1.bf16.msra.mxu0 0
    %174 = vmatprep.subr.bf16.mxu0 0
    %175 = vmatpush1.bf16.msra.mxu0 0
    %176 = vmatprep.subr.bf16.mxu0 0
    %177 = vmatpush1.bf16.msra.mxu0 0
    %178 = vmatprep.subr.bf16.mxu0 0
    %179 = vmatpush1.bf16.msra.mxu0 0
    %180 = vmatprep.subr.bf16.mxu0 0
    %181 = vmatpush1.bf16.msra.mxu0 0
    %182 = vmatprep.subr.bf16.mxu0 0
    %183 = vmatpush1.bf16.msra.mxu0 %v167
    %184 = vmatprep.subr.bf16.mxu0 0
    %185 = vmatpush2.bf16.msra.mxu0 0
    %186 = vmatprep.subr.bf16.mxu0 0
    %187 = vmatpush2.bf16.msra.mxu0 0
    %188 = vmatprep.subr.bf16.mxu0 0
    %189 = vmatpush2.bf16.msra.mxu0 0
    %190 = vmatprep.subr.bf16.mxu0 0
    %191 = vmatpush2.bf16.msra.mxu0 0
    %192 = vmatprep.subr.bf16.mxu0 0
    %193 = vmatpush2.bf16.msra.mxu0 0
    %194 = vmatprep.subr.bf16.mxu0 0
    %195 = vmatpush2.bf16.msra.mxu0 0
    %196 = vmatprep.subr.bf16.mxu0 0
    %197 = vmatpush2.bf16.msra.mxu0 0
    %198 = vmatprep.subr.bf16.mxu0 0
    %199 = vmatpush2.bf16.msra.mxu0 0
    %200 = vmatprep.mubr.bf16.mxu0 0
    %201 = vmatmul.mubr.bf16.gmra.mxu0 %v108
    %v202 = vpop.f32.mrf.mxu0
    %v203 = vadd.f32 0.0, %v202
    %v204 = vpop.f32.mrf.mxu0
    %v205 = vpop.f32.mrf.mxu0
    %v206 = vadd.f32 0.0, %v205
    %v207 = vpop.f32.mrf.mxu0
    %208 = vdwg.mxu0
    %v209 = vpack.c.bf16 %v206, %v203
    %v210 = vld [vmem:[#allocation2 + $0x8] sm:$0xf]
    %v211 = vld [vmem:[#allocation2 + $0xc] sm:$0xf]
    %v212 = vld [vmem:[#allocation2 + $0x10] sm:$0xf]
    %v213 = vld [vmem:[#allocation2 + $0x14] sm:$0xf]
    %v214 = vld [vmem:[#allocation4 + $0x3] sm:$0x1]
    %v215 = vlaneseq
    %v216 = vshrl.u32 %v215, 7
    %v217 = vsub.s32 0, %v216
    %v218 = vrot.slane %v214, %v217
    %v223 = vunpack.c.l.b16 %v210
    %v224 = vunpack.c.l.b16 %v211
    %v225 = vunpack.c.l.b16 %v212
    %v226 = vunpack.c.l.b16 %v213
    %v227 = vpack.c.b16 %v224, %v223
    %v228 = vpack.c.b16 %v226, %v225
    %vm231 = vcmask 261120
    %v233 = vsel %vm231, %v209, 0
    %235 = vmatprep.subr.bf16.mxu0 0
    %236 = vmatpush1.bf16.msra.mxu0 0
    %237 = vmatprep.subr.bf16.mxu0 0
    %238 = vmatpush1.bf16.msra.mxu0 0
    %239 = vmatprep.subr.bf16.mxu0 0
    %240 = vmatpush1.bf16.msra.mxu0 0
    %241 = vmatprep.subr.bf16.mxu0 0
    %242 = vmatpush1.bf16.msra.mxu0 0
    %243 = vmatprep.subr.bf16.mxu0 0
    %244 = vmatpush1.bf16.msra.mxu0 0
    %245 = vmatprep.subr.bf16.mxu0 0
    %246 = vmatpush1.bf16.msra.mxu0 0
    %247 = vmatprep.subr.bf16.mxu0 0
    %248 = vmatpush1.bf16.msra.mxu0 %v228
    %249 = vmatprep.subr.bf16.mxu0 0
    %250 = vmatpush1.bf16.msra.mxu0 %v227
    %251 = vmatprep.subr.bf16.mxu0 0
    %252 = vmatpush2.bf16.msra.mxu0 0
    %253 = vmatprep.subr.bf16.mxu0 0
    %254 = vmatpush2.bf16.msra.mxu0 0
    %255 = vmatprep.subr.bf16.mxu0 0
    %256 = vmatpush2.bf16.msra.mxu0 0
    %257 = vmatprep.subr.bf16.mxu0 0
    %258 = vmatpush2.bf16.msra.mxu0 0
    %259 = vmatprep.subr.bf16.mxu0 0
    %260 = vmatpush2.bf16.msra.mxu0 0
    %261 = vmatprep.subr.bf16.mxu0 0
    %262 = vmatpush2.bf16.msra.mxu0 0
    %263 = vmatprep.subr.bf16.mxu0 0
    %264 = vmatpush2.bf16.msra.mxu0 0
    %265 = vmatprep.subr.bf16.mxu0 0
    %266 = vmatpush2.bf16.msra.mxu0 0
    %267 = vmatprep.mubr.bf16.mxu0 0
    %268 = vmatmul.mubr.bf16.gmra.mxu0 %v233
    %v269 = vpop.f32.mrf.mxu0
    %v270 = vadd.f32 %v218, %v269
    %v271 = vpop.f32.mrf.mxu0
    %v272 = vpop.f32.mrf.mxu0
    %v273 = vadd.f32 %v218, %v272
    %v274 = vpop.f32.mrf.mxu0
    %275 = vdwg.mxu0
    %v276 = vmax.f32 %v270, 0.0
    %v277 = vmax.f32 %v273, 0.0
    %v278 = vld [vmem:[#allocation4 + $0x4] sm:$0x1]
    %v279 = vlaneseq
    %v280 = vshrl.u32 %v279, 7
    %v281 = vsub.s32 0, %v280
    %v282 = vrot.slane %v278, %v281
    %v283 = vmul.f32 %v276, %v282
    %v284 = vmul.f32 %v277, %v282
    %v285 = vld [vmem:[#allocation4 + $0x5] sm:$0x1]
    %v286 = vlaneseq
    %v287 = vshrl.u32 %v286, 7
    %v288 = vsub.s32 0, %v287
    %v289 = vrot.slane %v285, %v288
    %v290 = vadd.f32 %v283, %v289
    %v291 = vadd.f32 %v284, %v289
    %v292 = vpack.c.bf16 %v291, %v290
    %294 = vrot.lane.b32.xlu0 %v292, 32
    %v295 = vpop.permute.xlu0 %294
    %v298 = vsel %vm231, %v167, %v295
    %v299 = vld [vmem:[#allocation2 + $0x18] sm:$0xf]
    %v300 = vld [vmem:[#allocation2 + $0x1c] sm:$0xf]
    %v301 = vld [vmem:[#allocation2 + $0x20] sm:$0xf]
    %v302 = vld [vmem:[#allocation2 + $0x24] sm:$0xf]
    %v303 = vld [vmem:[#allocation2 + $0x28] sm:$0xf]
    %v304 = vld [vmem:[#allocation2 + $0x2c] sm:$0xf]
    %v305 = vld [vmem:[#allocation2 + $0x30] sm:$0xf]
    %v306 = vld [vmem:[#allocation2 + $0x34] sm:$0xf]
    %v307 = vld [vmem:[#allocation4 + $0x6] sm:$0x1]
    %v308 = vlaneseq
    %v309 = vshrl.u32 %v308, 7
    %v310 = vsub.s32 0, %v309
    %v311 = vrot.slane %v307, %v310
    %v320 = vunpack.c.l.b16 %v299
    %v321 = vunpack.c.l.b16 %v300
    %v322 = vunpack.c.l.b16 %v301
    %v323 = vunpack.c.l.b16 %v302
    %v324 = vunpack.c.l.b16 %v303
    %v325 = vunpack.c.l.b16 %v304
    %v326 = vunpack.c.l.b16 %v305
    %v327 = vunpack.c.l.b16 %v306
    %v328 = vpack.c.b16 %v321, %v320
    %v329 = vpack.c.b16 %v323, %v322
    %v330 = vpack.c.b16 %v325, %v324
    %v331 = vpack.c.b16 %v327, %v326
    %vm336 = vcmask 523264
    %v337 = vsel %vm336, %v298, 0
    %339 = vmatprep.subr.bf16.mxu0 0
    %340 = vmatpush1.bf16.msra.mxu0 0
    %341 = vmatprep.subr.bf16.mxu0 0
    %342 = vmatpush1.bf16.msra.mxu0 0
    %343 = vmatprep.subr.bf16.mxu0 0
    %344 = vmatpush1.bf16.msra.mxu0 0
    %345 = vmatprep.subr.bf16.mxu0 0
    %346 = vmatpush1.bf16.msra.mxu0 0
    %347 = vmatprep.subr.bf16.mxu0 0
    %348 = vmatpush1.bf16.msra.mxu0 %v331
    %349 = vmatprep.subr.bf16.mxu0 0
    %350 = vmatpush1.bf16.msra.mxu0 %v330
    %351 = vmatprep.subr.bf16.mxu0 0
    %352 = vmatpush1.bf16.msra.mxu0 %v329
    %353 = vmatprep.subr.bf16.mxu0 0
    %354 = vmatpush1.bf16.msra.mxu0 %v328
    %355 = vmatprep.subr.bf16.mxu0 0
    %356 = vmatpush2.bf16.msra.mxu0 0
    %357 = vmatprep.subr.bf16.mxu0 0
    %358 = vmatpush2.bf16.msra.mxu0 0
    %359 = vmatprep.subr.bf16.mxu0 0
    %360 = vmatpush2.bf16.msra.mxu0 0
    %361 = vmatprep.subr.bf16.mxu0 0
    %362 = vmatpush2.bf16.msra.mxu0 0
    %363 = vmatprep.subr.bf16.mxu0 0
    %364 = vmatpush2.bf16.msra.mxu0 0
    %365 = vmatprep.subr.bf16.mxu0 0
    %366 = vmatpush2.bf16.msra.mxu0 0
    %367 = vmatprep.subr.bf16.mxu0 0
    %368 = vmatpush2.bf16.msra.mxu0 0
    %369 = vmatprep.subr.bf16.mxu0 0
    %370 = vmatpush2.bf16.msra.mxu0 0
    %371 = vmatprep.mubr.bf16.mxu0 0
    %372 = vmatmul.mubr.bf16.gmra.mxu0 %v337
    %v373 = vpop.f32.mrf.mxu0
    %v374 = vadd.f32 %v311, %v373
    %v375 = vpop.f32.mrf.mxu0
    %v376 = vpop.f32.mrf.mxu0
    %v377 = vadd.f32 %v311, %v376
    %v378 = vpop.f32.mrf.mxu0
    %379 = vdwg.mxu0
    %v380 = vxor.u32 %v374, 2147483648
    %v381 = vxor.u32 %v377, 2147483648
    %v382 = vmul.f32 %v380, 1.442695
    %v383 = vpow.pop %v382
    %v384 = vmul.f32 %v381, 1.442695
    %v385 = vpow.pop %v384
    %v386 = vadd.f32 %v383, 1.0
    %v387 = vadd.f32 %v385, 1.0
    %v388 = vrcp.pop %v386
    %v389 = vmul.f32 1.0, %v388
    %v390 = vrcp.pop %v387
    %v391 = vmul.f32 1.0, %v390
    %v392 = vtanh.pop %v374
    %v393 = vtanh.pop %v377
    %396 = vrot.lane.b32.xlu0 %v392, 96
    %v397 = vpop.permute.xlu0 %396
    %398 = vrot.lane.b32.xlu0 %v393, 96
    %v399 = vpop.permute.xlu0 %398
    %v402 = vmul.f32 %v389, %v397
    %v403 = vmul.f32 %v391, %v399
    %v404 = vtanh.pop %v402
    %v405 = vtanh.pop %v403
    %408 = vrot.lane.b32.xlu0 %v404, 64
    %v409 = vpop.permute.xlu0 %408
    %410 = vrot.lane.b32.xlu0 %v405, 64
    %v411 = vpop.permute.xlu0 %410
    %v414 = vmul.f32 %v389, %v409
    %v415 = vmul.f32 %v391, %v411
    %v416 = vpack.c.bf16 %v415, %v414
    %v417 = vld [vmem:[#allocation2 + $0x38] sm:$0xf]
    %v418 = vld [vmem:[#allocation2 + $0x3c] sm:$0xf]
    %v419 = vld [vmem:[#allocation2 + $0x40] sm:$0xf]
    %v420 = vld [vmem:[#allocation2 + $0x44] sm:$0xf]
    %v421 = vld [vmem:[#allocation4 + $0x7] sm:$0x1]
    %v422 = vlaneseq
    %v423 = vshrl.u32 %v422, 7
    %v424 = vsub.s32 0, %v423
    %v425 = vrot.slane %v421, %v424
    %427 = vrot.lane.b32.xlu0 %v416, 64
    %v428 = vpop.permute.xlu0 %427
    %v433 = vunpack.c.l.b16 %v417
    %v434 = vunpack.c.l.b16 %v418
    %v435 = vunpack.c.l.b16 %v419
    %v436 = vunpack.c.l.b16 %v420
    %v437 = vpack.c.b16 %v434, %v433
    %v438 = vpack.c.b16 %v436, %v435
    %v442 = vsel %vm231, %v428, 0
    %444 = vmatprep.subr.bf16.mxu0 0
    %445 = vmatpush1.bf16.msra.mxu0 0
    %446 = vmatprep.subr.bf16.mxu0 0
    %447 = vmatpush1.bf16.msra.mxu0 0
    %448 = vmatprep.subr.bf16.mxu0 0
    %449 = vmatpush1.bf16.msra.mxu0 0
    %450 = vmatprep.subr.bf16.mxu0 0
    %451 = vmatpush1.bf16.msra.mxu0 0
    %452 = vmatprep.subr.bf16.mxu0 0
    %453 = vmatpush1.bf16.msra.mxu0 0
    %454 = vmatprep.subr.bf16.mxu0 0
    %455 = vmatpush1.bf16.msra.mxu0 0
    %456 = vmatprep.subr.bf16.mxu0 0
    %457 = vmatpush1.bf16.msra.mxu0 %v438
    %458 = vmatprep.subr.bf16.mxu0 0
    %459 = vmatpush1.bf16.msra.mxu0 %v437
    %460 = vmatprep.subr.bf16.mxu0 0
    %461 = vmatpush2.bf16.msra.mxu0 0
    %462 = vmatprep.subr.bf16.mxu0 0
    %463 = vmatpush2.bf16.msra.mxu0 0
    %464 = vmatprep.subr.bf16.mxu0 0
    %465 = vmatpush2.bf16.msra.mxu0 0
    %466 = vmatprep.subr.bf16.mxu0 0
    %467 = vmatpush2.bf16.msra.mxu0 0
    %468 = vmatprep.subr.bf16.mxu0 0
    %469 = vmatpush2.bf16.msra.mxu0 0
    %470 = vmatprep.subr.bf16.mxu0 0
    %471 = vmatpush2.bf16.msra.mxu0 0
    %472 = vmatprep.subr.bf16.mxu0 0
    %473 = vmatpush2.bf16.msra.mxu0 0
    %474 = vmatprep.subr.bf16.mxu0 0
    %475 = vmatpush2.bf16.msra.mxu0 0
    %476 = vmatprep.mubr.bf16.mxu0 0
    %477 = vmatmul.mubr.bf16.gmra.mxu0 %v442
    %v478 = vpop.f32.mrf.mxu0
    %v479 = vadd.f32 %v425, %v478
    %v480 = vpop.f32.mrf.mxu0
    %v481 = vpop.f32.mrf.mxu0
    %v482 = vadd.f32 %v425, %v481
    %v483 = vpop.f32.mrf.mxu0
    %484 = vdwg.mxu0
    %v485 = vxor.u32 %v479, 2147483648
    %v486 = vxor.u32 %v482, 2147483648
    %v487 = vmul.f32 %v485, 1.442695
    %v488 = vpow.pop %v487
    %v489 = vmul.f32 %v486, 1.442695
    %v490 = vpow.pop %v489
    %v491 = vadd.f32 %v488, 1.0
    %v492 = vadd.f32 %v490, 1.0
    %v493 = vrcp.pop %v491
    %v494 = vmul.f32 1.0, %v493
    %v495 = vrcp.pop %v492
    %v496 = vmul.f32 1.0, %v495
    %v497 = vtanh.pop %v479
    %v498 = vtanh.pop %v482
    %501 = vrot.lane.b32.xlu0 %v497, 96
    %v502 = vpop.permute.xlu0 %501
    %503 = vrot.lane.b32.xlu0 %v498, 96
    %v504 = vpop.permute.xlu0 %503
    %v507 = vmul.f32 %v494, %v502
    %v508 = vmul.f32 %v496, %v504
    %v509 = vtanh.pop %v507
    %v510 = vtanh.pop %v508
    %513 = vrot.lane.b32.xlu0 %v509, 64
    %v514 = vpop.permute.xlu0 %513
    %515 = vrot.lane.b32.xlu0 %v510, 64
    %v516 = vpop.permute.xlu0 %515
    %v519 = vmul.f32 %v494, %v514
    %v520 = vmul.f32 %v496, %v516
    %v521 = vmax.f32 %v414, 0.0
    %v522 = vmax.f32 %v415, 0.0
    %v523 = vmax.f32 %v519, 0.0
    %v524 = vmax.f32 %v520, 0.0
    %v525 = vmax.f32 %v42, 0.0
    %v526 = vmax.f32 %v43, 0.0
    %529 = vrot.lane.b32.xlu0 %v521, 64
    %v530 = vpop.permute.xlu0 %529
    %531 = vrot.lane.b32.xlu0 %v522, 64
    %v532 = vpop.permute.xlu0 %531
    %537 = vrot.lane.b32.xlu0 %v523, 96
    %v538 = vpop.permute.xlu0 %537
    %539 = vrot.lane.b32.xlu0 %v524, 96
    %v540 = vpop.permute.xlu0 %539
    %545 = vrot.lane.b32.xlu0 %v525, 64
    %v546 = vpop.permute.xlu0 %545
    %547 = vrot.lane.b32.xlu0 %v526, 64
    %v548 = vpop.permute.xlu0 %547
    %v551 = vsel %vm231, %v530, %v538
    %v552 = vsel %vm231, %v532, %v540
    %v553 = vsel %vm336, %v551, %v546
    %v554 = vsel %vm336, %v552, %v548
    %v555 = vld [vmem:[#allocation4 + $0x8] sm:$0x1]
    %v556 = vlaneseq
    %v557 = vshrl.u32 %v556, 7
    %v558 = vsub.s32 0, %v557
    %v559 = vrot.slane %v555, %v558
    %v560 = vmul.f32 %v553, %v559
    %v561 = vmul.f32 %v554, %v559
    %vm562 = vcmask 556032
    %v563 = vsel %vm562, %v560, 0.0
    %564 = vadd.xlane.f32.xlu0 %v563
    %v565 = vpop.xlane.xlu0 %564
    %v566 = vsel %vm562, %v561, 0.0
    %567 = vadd.xlane.f32.xlu0 %v566
    %v568 = vpop.xlane.xlu0 %567
    %v569 = vld [vmem:[#allocation4 + $0x9] sm:$0x1]
    %v570 = vlaneseq
    %v571 = vshrl.u32 %v570, 7
    %v572 = vsub.s32 0, %v571
    %v573 = vrot.slane %v569, %v572
    %v574 = vadd.f32 %v565, %v573
    %v575 = vadd.f32 %v568, %v573
    %v576 = vtanh.pop %v574
    %v577 = vtanh.pop %v575
    %vm578 = vcmask 7168
    %579 = vst.msk [vmem:[%s2] sm:$0xff] %vm578, %v576
    %580 = vst.msk [vmem:[%s2 + $0x8] sm:$0xff] %vm578, %v577
    // Predicated region
    $region18: #{tpu_custom_call.1} parent=1 // pred_check
      _
    $region19: #{tpu_custom_call.1} parent=1 // pred_check_branch
      %582 = sbr.rel (0) target = $region21
    $region20: #{tpu_custom_call.1} parent=1 // pred_region
      _
    $region21: #{tpu_custom_call.1} parent=1 // pred_fallthru
      _
    // Predicated region
    $region22: #{tpu_custom_call.1} parent=1 // pred_check
      _
    $region23: #{tpu_custom_call.1} parent=1 // pred_check_branch
      %584 = sbr.rel (0) target = $region25
    $region24: #{tpu_custom_call.1} parent=1 // pred_region
      _
    $region25: #{tpu_custom_call.1} parent=1 // pred_fallthru
      _
    %585 = vsyncpa [#allocation3], 1
    %586 = vsyncpa [#allocation5], 1

</llo_original>
